<compile_context>
chip_gen: v7x
topology: tpu7x:2x2x1
jax: 0.10.0
libtpu: 0.0.40
codegen_flags: <defaults>
</compile_context>

<pallas_src>
import functools
import math

import jax
import jax.numpy as jnp
from jax.experimental import pallas as pl
from jax.experimental.pallas import tpu as pltpu

HID = 256      # hidden width of the actor MLP
OUT_PAD = 128  # lane-dense padded logit width (n_actions <= 128)
SUB = 2        # independent row sub-chains per tile (MXU/EUP overlap)


def actor_kernel(x_ref, w1_ref, b1_ref, w2_ref, b2_ref, w3_ref, b3_ref,
                 w4_ref, b4_ref, out_ref):
    tm = x_ref.shape[0]
    # Only split when the sub-tiles stay 16-row aligned (bf16 store granularity).
    n_sub = SUB if tm % (16 * SUB) == 0 else 1
    sub = tm // n_sub

    # Weights/biases are VMEM-resident; read once per grid step.
    w1 = w1_ref[...]; w2 = w2_ref[...]; w3 = w3_ref[...]; w4 = w4_ref[...]
    b1 = b1_ref[...]; b2 = b2_ref[...]; b3 = b3_ref[...]; b4 = b4_ref[...]

    for s in range(n_sub):                               # static unroll
        rows = pl.ds(s * sub, sub)
        xb = x_ref[rows, :].astype(jnp.bfloat16)
        # Layers 1-3: MXU matmul (bf16 in, f32 acc) + bias, tanh on the bf16 EUP path.
        h = jnp.tanh((jnp.dot(xb, w1, preferred_element_type=jnp.float32) + b1)
                     .astype(jnp.bfloat16))
        h = jnp.tanh((jnp.dot(h, w2, preferred_element_type=jnp.float32) + b2)
                     .astype(jnp.bfloat16))
        h = jnp.tanh((jnp.dot(h, w3, preferred_element_type=jnp.float32) + b3)
                     .astype(jnp.bfloat16))
        # Layer 4: Linear (no activation) -> lane-dense 128-wide bf16 logit slab.
        q = jnp.dot(h, w4, preferred_element_type=jnp.float32) + b4
        out_ref[rows, :] = q.astype(out_ref.dtype)


@functools.partial(jax.jit, static_argnames=("tm",))
def _actor_forward(x, w1, b1, w2, b2, w3, b3, w4, b4, *, tm):
    B, obs_dim = x.shape
    grid = (pl.cdiv(B, tm),)

    def resident(shape):
        # Constant block index: array stays VMEM-resident across the whole grid.
        return pl.BlockSpec(shape, lambda i: (0, 0))

    flops = 2 * B * (obs_dim * HID + 2 * HID * HID + HID * OUT_PAD)
    transcendentals = 3 * B * HID
    weight_bytes = sum(a.size * a.dtype.itemsize
                       for a in (w1, b1, w2, b2, w3, b3, w4, b4))
    bytes_accessed = x.size * x.dtype.itemsize + B * OUT_PAD * 2 + weight_bytes

    return pl.pallas_call(
        actor_kernel,
        out_shape=jax.ShapeDtypeStruct((B, OUT_PAD), jnp.bfloat16),
        grid=grid,
        in_specs=[
            pl.BlockSpec((tm, obs_dim), lambda i: (i, 0)),   # streamed x tile (unpadded)
            resident(w1.shape), resident(b1.shape),
            resident(w2.shape), resident(b2.shape),
            resident(w3.shape), resident(b3.shape),
            resident(w4.shape), resident(b4.shape),
        ],
        out_specs=pl.BlockSpec((tm, OUT_PAD), lambda i: (i, 0)),
        compiler_params=pltpu.CompilerParams(
            dimension_semantics=("parallel",)),              # dual-TC shard on v7x
        cost_estimate=pl.CostEstimate(
            flops=flops, transcendentals=transcendentals,
            bytes_accessed=bytes_accessed),
    )(x, w1, b1, w2, b2, w3, b3, w4, b4)


_TM_MENU = (512, 256, 128)   # fixed tile menu: 128/256-aligned, limits recompiles


def _round_up(x, m):
    return ((x + m - 1) // m) * m


def _pick_tm(B):
    # Largest tile from the menu that still yields >= 2 grid steps: amortizes the
    # ~0.35 us/step overhead, fills the 256-wide MXU M dim, and lets the "parallel"
    # batch axis shard across v7x's two TensorCores.
    for tm in _TM_MENU:
        if B >= 2 * tm:
            return tm
    if B >= _TM_MENU[-1]:
        return _TM_MENU[-1]
    # Tiny RL batches: a single sublane/bf16-aligned tile covering the whole batch.
    return max(16, _round_up(B, 16))


def qreps_policy_forward(x, prepared_params, n_actions):
    """x: (B, obs_dim) f32 observations.  Returns logits (B, n_actions) f32."""
    B, _ = x.shape
    tm = _pick_tm(B)
    if B < tm:
        # Only for tiny batches (tm = round_up(B, 16) > B): pad at most 15 rows so
        # the single tile is full.  For B >= 128 no wrapper padding happens at all;
        # the ragged last tile is handled by Pallas (masked writeback).
        x = jnp.pad(x, ((0, tm - B), (0, 0)))
    out = _actor_forward(x, *prepared_params, tm=tm)     # (>=B, OUT_PAD) bf16 slab
    return out[:B, :n_actions].astype(jnp.float32)


def init_params(key, obs_dim, hidden, n_actions):
    """Orthogonal weights (std sqrt(2), last layer std 0.01), zero biases.
    Weights are stored as (in_features, out_features) — transpose of nn.Linear."""
    k1, k2, k3, k4 = jax.random.split(key, 4)
    ortho = jax.nn.initializers.orthogonal
    std2 = math.sqrt(2.0)
    w1 = ortho(std2)(k1, (obs_dim, hidden), jnp.float32)
    b1 = jnp.zeros((1, hidden), jnp.float32)
    w2 = ortho(std2)(k2, (hidden, hidden), jnp.float32)
    b2 = jnp.zeros((1, hidden), jnp.float32)
    w3 = ortho(std2)(k3, (hidden, hidden), jnp.float32)
    b3 = jnp.zeros((1, hidden), jnp.float32)
    w4 = ortho(0.01)(k4, (hidden, n_actions), jnp.float32)
    b4 = jnp.zeros((1, n_actions), jnp.float32)
    return (w1, b1, w2, b2, w3, b3, w4, b4)


def prepare_params(params_f32, n_actions):
    """Cast matmul weights to bf16 (biases stay f32); zero-pad only the last layer
    to the lane-dense OUT_PAD width so the output store is an unmasked 128-lane vst."""
    w1, b1, w2, b2, w3, b3, w4, b4 = params_f32
    hid = w4.shape[0]
    w4p = jnp.zeros((hid, OUT_PAD), jnp.float32).at[:, :n_actions].set(w4)
    b4p = jnp.zeros((1, OUT_PAD), jnp.float32).at[:, :n_actions].set(b4)
    return (w1.astype(jnp.bfloat16), b1,
            w2.astype(jnp.bfloat16), b2,
            w3.astype(jnp.bfloat16), b3,
            w4p.astype(jnp.bfloat16), b4p)


def reference_forward(x, w1, b1, w2, b2, w3, b3, w4, b4):
    h = jnp.tanh(x @ w1 + b1)
    h = jnp.tanh(h @ w2 + b2)
    h = jnp.tanh(h @ w3 + b3)
    return h @ w4 + b4


if __name__ == "__main__":
    # LunarLander-v2: observation dim 8, 4 discrete actions.
    OBS_DIM, N_ACTIONS = 8, 4

    key = jax.random.PRNGKey(0)
    k_x, k_x2, k_p = jax.random.split(key, 3)
    params = init_params(k_p, OBS_DIM, HID, N_ACTIONS)
    prepared = prepare_params(params, N_ACTIONS)

    # Small RL-style batch: single full tile (tm == B == 64), grid = (1,).
    x_small = jax.random.normal(k_x, (64, OBS_DIM), jnp.float32)
    logits_small = jax.block_until_ready(
        qreps_policy_forward(x_small, prepared, N_ACTIONS))
    ref_small = reference_forward(x_small, *params)
    assert logits_small.shape == (64, N_ACTIONS)
    # bf16 weights/activations with f32 accumulation -> loose tolerance vs f32 ref.
    assert jnp.allclose(logits_small, ref_small, atol=5e-2, rtol=5e-2), float(
        jnp.max(jnp.abs(logits_small - ref_small)))

    # Larger batch: tm = 128, grid = (2,) with a ragged last tile (192 % 128 != 0)
    # handled by Pallas with no wrapper padding; exercises the pipelined / dual-TC path.
    x_big = jax.random.normal(k_x2, (192, OBS_DIM), jnp.float32)
    logits_big = jax.block_until_ready(
        qreps_policy_forward(x_big, prepared, N_ACTIONS))
    ref_big = reference_forward(x_big, *params)
    assert logits_big.shape == (192, N_ACTIONS)
    assert jnp.allclose(logits_big, ref_big, atol=5e-2, rtol=5e-2), float(
        jnp.max(jnp.abs(logits_big - ref_big)))

    # TODO(synk): get_action's Categorical sampling / log_softmax is post-processing
    # outside the module's forward pass, so it is left to plain JAX.
    print("KERNEL_OK")
</pallas_src>

<mosaic_0001>
module attributes {stable_mosaic.version = 11 : i64} {
  func.func @actor_kernel(%arg0: i32, %arg1: memref<64x8xf32, #tpu.memory_space<vmem>>, %arg2: memref<8x256xbf16, #tpu.memory_space<vmem>>, %arg3: memref<1x256xf32, #tpu.memory_space<vmem>>, %arg4: memref<256x256xbf16, #tpu.memory_space<vmem>>, %arg5: memref<1x256xf32, #tpu.memory_space<vmem>>, %arg6: memref<256x256xbf16, #tpu.memory_space<vmem>>, %arg7: memref<1x256xf32, #tpu.memory_space<vmem>>, %arg8: memref<256x128xbf16, #tpu.memory_space<vmem>>, %arg9: memref<1x128xf32, #tpu.memory_space<vmem>>, %arg10: memref<64x128xbf16, #tpu.memory_space<vmem>>) attributes {dimension_semantics = [#tpu.dimension_semantics<parallel>], iteration_bounds = array<i64: 1>, scalar_prefetch = 0 : i64, scratch_operands = 0 : i64, tpu.core_type = #tpu.core_type<tc>, window_params = [{transform_indices = @transform_0, window_bounds = array<i64: 64, 8>}, {pipeline_mode = #tpu.pipeline_mode<synchronous>, transform_indices = @transform_1, window_bounds = array<i64: 8, 256>}, {pipeline_mode = #tpu.pipeline_mode<synchronous>, transform_indices = @transform_2, window_bounds = array<i64: 1, 256>}, {pipeline_mode = #tpu.pipeline_mode<synchronous>, transform_indices = @transform_3, window_bounds = array<i64: 256, 256>}, {pipeline_mode = #tpu.pipeline_mode<synchronous>, transform_indices = @transform_4, window_bounds = array<i64: 1, 256>}, {pipeline_mode = #tpu.pipeline_mode<synchronous>, transform_indices = @transform_5, window_bounds = array<i64: 256, 256>}, {pipeline_mode = #tpu.pipeline_mode<synchronous>, transform_indices = @transform_6, window_bounds = array<i64: 1, 256>}, {pipeline_mode = #tpu.pipeline_mode<synchronous>, transform_indices = @transform_7, window_bounds = array<i64: 256, 128>}, {pipeline_mode = #tpu.pipeline_mode<synchronous>, transform_indices = @transform_8, window_bounds = array<i64: 1, 128>}, {transform_indices = @transform_9, window_bounds = array<i64: 64, 128>}]} {
    %c0 = arith.constant 0 : index
    %c0_0 = arith.constant 0 : index
    %0 = vector.load %arg2[%c0, %c0_0] : memref<8x256xbf16, #tpu.memory_space<vmem>>, vector<8x256xbf16>
    %c0_1 = arith.constant 0 : index
    %c0_2 = arith.constant 0 : index
    %1 = vector.load %arg4[%c0_1, %c0_2] : memref<256x256xbf16, #tpu.memory_space<vmem>>, vector<256x256xbf16>
    %c0_3 = arith.constant 0 : index
    %c0_4 = arith.constant 0 : index
    %2 = vector.load %arg6[%c0_3, %c0_4] : memref<256x256xbf16, #tpu.memory_space<vmem>>, vector<256x256xbf16>
    %c0_5 = arith.constant 0 : index
    %c0_6 = arith.constant 0 : index
    %3 = vector.load %arg8[%c0_5, %c0_6] : memref<256x128xbf16, #tpu.memory_space<vmem>>, vector<256x128xbf16>
    %c0_7 = arith.constant 0 : index
    %c0_8 = arith.constant 0 : index
    %4 = vector.load %arg3[%c0_7, %c0_8] : memref<1x256xf32, #tpu.memory_space<vmem>>, vector<1x256xf32>
    %c0_9 = arith.constant 0 : index
    %c0_10 = arith.constant 0 : index
    %5 = vector.load %arg5[%c0_9, %c0_10] : memref<1x256xf32, #tpu.memory_space<vmem>>, vector<1x256xf32>
    %c0_11 = arith.constant 0 : index
    %c0_12 = arith.constant 0 : index
    %6 = vector.load %arg7[%c0_11, %c0_12] : memref<1x256xf32, #tpu.memory_space<vmem>>, vector<1x256xf32>
    %c0_13 = arith.constant 0 : index
    %c0_14 = arith.constant 0 : index
    %7 = vector.load %arg9[%c0_13, %c0_14] : memref<1x128xf32, #tpu.memory_space<vmem>>, vector<1x128xf32>
    %c0_15 = arith.constant 0 : index
    %c0_16 = arith.constant 0 : index
    %8 = vector.load %arg1[%c0_15, %c0_16] : memref<64x8xf32, #tpu.memory_space<vmem>>, vector<32x8xf32>
    %9 = arith.truncf %8 : vector<32x8xf32> to vector<32x8xbf16>
    %cst = arith.constant dense<0.000000e+00> : vector<32x256xf32>
    %10 = tpu.matmul %9, %0, %cst {dimension_numbers = #tpu.dot_dimension_numbers<[1], [0], [0], [1], [0, 0, 1, 1], [], []>} : vector<32x8xbf16>, vector<8x256xbf16>, vector<32x256xf32> -> vector<32x256xf32>
    %11 = vector.broadcast %4 : vector<1x256xf32> to vector<32x256xf32>
    %12 = arith.addf %10, %11 : vector<32x256xf32>
    %13 = arith.truncf %12 : vector<32x256xf32> to vector<32x256xbf16>
    %14 = math.tanh %13 : vector<32x256xbf16>
    %cst_17 = arith.constant dense<0.000000e+00> : vector<32x256xf32>
    %15 = tpu.matmul %14, %1, %cst_17 {dimension_numbers = #tpu.dot_dimension_numbers<[1], [0], [0], [1], [0, 0, 1, 1], [], []>} : vector<32x256xbf16>, vector<256x256xbf16>, vector<32x256xf32> -> vector<32x256xf32>
    %16 = vector.broadcast %5 : vector<1x256xf32> to vector<32x256xf32>
    %17 = arith.addf %15, %16 : vector<32x256xf32>
    %18 = arith.truncf %17 : vector<32x256xf32> to vector<32x256xbf16>
    %19 = math.tanh %18 : vector<32x256xbf16>
    %cst_18 = arith.constant dense<0.000000e+00> : vector<32x256xf32>
    %20 = tpu.matmul %19, %2, %cst_18 {dimension_numbers = #tpu.dot_dimension_numbers<[1], [0], [0], [1], [0, 0, 1, 1], [], []>} : vector<32x256xbf16>, vector<256x256xbf16>, vector<32x256xf32> -> vector<32x256xf32>
    %21 = vector.broadcast %6 : vector<1x256xf32> to vector<32x256xf32>
    %22 = arith.addf %20, %21 : vector<32x256xf32>
    %23 = arith.truncf %22 : vector<32x256xf32> to vector<32x256xbf16>
    %24 = math.tanh %23 : vector<32x256xbf16>
    %cst_19 = arith.constant dense<0.000000e+00> : vector<32x128xf32>
    %25 = tpu.matmul %24, %3, %cst_19 {dimension_numbers = #tpu.dot_dimension_numbers<[1], [0], [0], [1], [0, 0, 1, 1], [], []>} : vector<32x256xbf16>, vector<256x128xbf16>, vector<32x128xf32> -> vector<32x128xf32>
    %26 = vector.broadcast %7 : vector<1x128xf32> to vector<32x128xf32>
    %27 = arith.addf %25, %26 : vector<32x128xf32>
    %28 = arith.truncf %27 : vector<32x128xf32> to vector<32x128xbf16>
    %c0_20 = arith.constant 0 : index
    %c0_21 = arith.constant 0 : index
    %29 = vector.load %arg10[%c0_20, %c0_21] : memref<64x128xbf16, #tpu.memory_space<vmem>>, vector<32x128xbf16>
    tpu.vector_store %arg10[%c0_20, %c0_21], %28 {strides = array<i32>} : memref<64x128xbf16, #tpu.memory_space<vmem>>, vector<32x128xbf16>,
    %c32 = arith.constant 32 : index
    %c0_22 = arith.constant 0 : index
    %30 = vector.load %arg1[%c32, %c0_22] : memref<64x8xf32, #tpu.memory_space<vmem>>, vector<32x8xf32>
    %31 = arith.truncf %30 : vector<32x8xf32> to vector<32x8xbf16>
    %cst_23 = arith.constant dense<0.000000e+00> : vector<32x256xf32>
    %32 = tpu.matmul %31, %0, %cst_23 {dimension_numbers = #tpu.dot_dimension_numbers<[1], [0], [0], [1], [0, 0, 1, 1], [], []>} : vector<32x8xbf16>, vector<8x256xbf16>, vector<32x256xf32> -> vector<32x256xf32>
    %33 = vector.broadcast %4 : vector<1x256xf32> to vector<32x256xf32>
    %34 = arith.addf %32, %33 : vector<32x256xf32>
    %35 = arith.truncf %34 : vector<32x256xf32> to vector<32x256xbf16>
    %36 = math.tanh %35 : vector<32x256xbf16>
    %cst_24 = arith.constant dense<0.000000e+00> : vector<32x256xf32>
    %37 = tpu.matmul %36, %1, %cst_24 {dimension_numbers = #tpu.dot_dimension_numbers<[1], [0], [0], [1], [0, 0, 1, 1], [], []>} : vector<32x256xbf16>, vector<256x256xbf16>, vector<32x256xf32> -> vector<32x256xf32>
    %38 = vector.broadcast %5 : vector<1x256xf32> to vector<32x256xf32>
    %39 = arith.addf %37, %38 : vector<32x256xf32>
    %40 = arith.truncf %39 : vector<32x256xf32> to vector<32x256xbf16>
    %41 = math.tanh %40 : vector<32x256xbf16>
    %cst_25 = arith.constant dense<0.000000e+00> : vector<32x256xf32>
    %42 = tpu.matmul %41, %2, %cst_25 {dimension_numbers = #tpu.dot_dimension_numbers<[1], [0], [0], [1], [0, 0, 1, 1], [], []>} : vector<32x256xbf16>, vector<256x256xbf16>, vector<32x256xf32> -> vector<32x256xf32>
    %43 = vector.broadcast %6 : vector<1x256xf32> to vector<32x256xf32>
    %44 = arith.addf %42, %43 : vector<32x256xf32>
    %45 = arith.truncf %44 : vector<32x256xf32> to vector<32x256xbf16>
    %46 = math.tanh %45 : vector<32x256xbf16>
    %cst_26 = arith.constant dense<0.000000e+00> : vector<32x128xf32>
    %47 = tpu.matmul %46, %3, %cst_26 {dimension_numbers = #tpu.dot_dimension_numbers<[1], [0], [0], [1], [0, 0, 1, 1], [], []>} : vector<32x256xbf16>, vector<256x128xbf16>, vector<32x128xf32> -> vector<32x128xf32>
    %48 = vector.broadcast %7 : vector<1x128xf32> to vector<32x128xf32>
    %49 = arith.addf %47, %48 : vector<32x128xf32>
    %50 = arith.truncf %49 : vector<32x128xf32> to vector<32x128xbf16>
    %c32_27 = arith.constant 32 : index
    %c0_28 = arith.constant 0 : index
    %51 = vector.load %arg10[%c32_27, %c0_28] : memref<64x128xbf16, #tpu.memory_space<vmem>>, vector<32x128xbf16>
    tpu.vector_store %arg10[%c32_27, %c0_28], %50 {strides = array<i32>} : memref<64x128xbf16, #tpu.memory_space<vmem>>, vector<32x128xbf16>,
    return
  }
  func.func @transform_0(%arg0: i32) -> (i32, i32) {
    %c0_i32 = arith.constant 0 : i32
    %c0_i32_0 = arith.constant 0 : i32
    return %arg0, %c0_i32 : i32, i32
  }
  func.func @transform_1(%arg0: i32) -> (i32, i32) {
    %c0_i32 = arith.constant 0 : i32
    %c0_i32_0 = arith.constant 0 : i32
    %c0_i32_1 = arith.constant 0 : i32
    return %c0_i32, %c0_i32_0 : i32, i32
  }
  func.func @transform_2(%arg0: i32) -> (i32, i32) {
    %c0_i32 = arith.constant 0 : i32
    %c0_i32_0 = arith.constant 0 : i32
    %c0_i32_1 = arith.constant 0 : i32
    return %c0_i32, %c0_i32_0 : i32, i32
  }
  func.func @transform_3(%arg0: i32) -> (i32, i32) {
    %c0_i32 = arith.constant 0 : i32
    %c0_i32_0 = arith.constant 0 : i32
    %c0_i32_1 = arith.constant 0 : i32
    return %c0_i32, %c0_i32_0 : i32, i32
  }
  func.func @transform_4(%arg0: i32) -> (i32, i32) {
    %c0_i32 = arith.constant 0 : i32
    %c0_i32_0 = arith.constant 0 : i32
    %c0_i32_1 = arith.constant 0 : i32
    return %c0_i32, %c0_i32_0 : i32, i32
  }
  func.func @transform_5(%arg0: i32) -> (i32, i32) {
    %c0_i32 = arith.constant 0 : i32
    %c0_i32_0 = arith.constant 0 : i32
    %c0_i32_1 = arith.constant 0 : i32
    return %c0_i32, %c0_i32_0 : i32, i32
  }
  func.func @transform_6(%arg0: i32) -> (i32, i32) {
    %c0_i32 = arith.constant 0 : i32
    %c0_i32_0 = arith.constant 0 : i32
    %c0_i32_1 = arith.constant 0 : i32
    return %c0_i32, %c0_i32_0 : i32, i32
  }
  func.func @transform_7(%arg0: i32) -> (i32, i32) {
    %c0_i32 = arith.constant 0 : i32
    %c0_i32_0 = arith.constant 0 : i32
    %c0_i32_1 = arith.constant 0 : i32
    return %c0_i32, %c0_i32_0 : i32, i32
  }
  func.func @transform_8(%arg0: i32) -> (i32, i32) {
    %c0_i32 = arith.constant 0 : i32
    %c0_i32_0 = arith.constant 0 : i32
    %c0_i32_1 = arith.constant 0 : i32
    return %c0_i32, %c0_i32_0 : i32, i32
  }
  func.func @transform_9(%arg0: i32) -> (i32, i32) {
    %c0_i32 = arith.constant 0 : i32
    %c0_i32_0 = arith.constant 0 : i32
    return %arg0, %c0_i32 : i32, i32
  }
}

</mosaic_0001>

<llo_original>
// kernel: _actor_forward.1
$region0: #{_actor_forward.1}
  #allocation0 [shape = 'u32[]', space=smem, size = 0x4, offset = 0x4, fixed_abs, tag = 'smem constant byte address 0x4 - core index']
  #allocation1 [shape = 'u32[144,128]{1,0:T(1,128)}', space=vmem, size = 0x12000, scoped, tag = 'internal scratch']
  %s0 = inlined_call_operand.vmem [shape: f32[64,8], index: 0, kind: input, shape index: {}]
  %s1 = inlined_call_operand.vmem [shape: bf16[8,256], index: 1, kind: input, shape index: {}]
  %s2 = inlined_call_operand.vmem [shape: f32[1,256], index: 2, kind: input, shape index: {}]
  %s3 = inlined_call_operand.hbm [shape: bf16[256,256], index: 3, kind: input, shape index: {}]
  %s4 = inlined_call_operand.vmem [shape: f32[1,256], index: 4, kind: input, shape index: {}]
  %s5 = inlined_call_operand.hbm [shape: bf16[256,256], index: 5, kind: input, shape index: {}]
  %s6 = inlined_call_operand.vmem [shape: f32[1,256], index: 6, kind: input, shape index: {}]
  %s7 = inlined_call_operand.hbm [shape: bf16[256,128], index: 7, kind: input, shape index: {}]
  %s8 = inlined_call_operand.vmem [shape: f32[1,128], index: 8, kind: input, shape index: {}]
  %s9 = inlined_call_operand.hbm [shape: bf16[64,128], index: 9, kind: output, shape index: {}]
  %s10 = sld [smem:[#allocation0]]
  $region58: #{_actor_forward.1} parent=0
    _
  %s12 = ssub.s32 1, %s10
  %s13 = scalar_select 0, %s12, %s10
  $region1: #{_actor_forward.1} parent=0
    #allocation2 [shape = 'u8[131072]{0}', space=vmem, size = 0x20000, scoped, tag = 'input window, operand 3, single buffered']
    #allocation3 [shape = 's32[1]{0}', space=sflag, size = 0x4, scoped, tag = 'scoped memory for _actor_forward.1']
    #allocation4 [shape = 's32[1]{0}', space=sflag, size = 0x4, scoped, tag = 'scoped memory for _actor_forward.1']
    #allocation5 [shape = 'u8[131072]{0}', space=vmem, size = 0x20000, scoped, tag = 'input window, operand 5, single buffered']
    #allocation6 [shape = 's32[1]{0}', space=sflag, size = 0x4, scoped, tag = 'scoped memory for _actor_forward.1']
    #allocation7 [shape = 'u8[65536]{0}', space=vmem, size = 0x10000, scoped, tag = 'input window, operand 7, single buffered']
    #allocation8 [shape = 'u8[16384]{0}', space=vmem, size = 0x4000, scoped, tag = 'output window, operand 0, single buffered']
    %14 = vsyncpa [#allocation3], 0
    %15 = vsyncpa [#allocation6], 0
    %16 = vsyncpa [#allocation4], 0
    // Predicated region
    $region2: #{_actor_forward.1} parent=1 // pred_check
      _
    $region3: #{_actor_forward.1} parent=1 // pred_check_branch
      %18 = sbr.rel (0) target = $region5
    $region4: #{_actor_forward.1} parent=1 // pred_region
      _
    $region5: #{_actor_forward.1} parent=1 // pred_fallthru
      _
    // Predicated region
    $region6: #{_actor_forward.1} parent=1 // pred_check
      _
    $region7: #{_actor_forward.1} parent=1 // pred_check_branch
      %20 = sbr.rel (0) target = $region9
    $region8: #{_actor_forward.1} parent=1 // pred_region
      _
    $region9: #{_actor_forward.1} parent=1 // pred_fallthru
      _
    // Predicated region
    $region10: #{_actor_forward.1} parent=1 // pred_check
      _
    $region11: #{_actor_forward.1} parent=1 // pred_check_branch
      %22 = sbr.rel (0) target = $region13
    $region12: #{_actor_forward.1} parent=1 // pred_region
      _
    $region13: #{_actor_forward.1} parent=1 // pred_fallthru
      _
    // Predicated region
    $region14: #{_actor_forward.1} parent=1 // pred_check
      _
    $region15: #{_actor_forward.1} parent=1 // pred_check_branch
      %24 = sbr.rel (0) target = $region17
    $region16: #{_actor_forward.1} parent=1 // pred_region
      %s26 = ssub.s32 4096, 4096
      %27 = vsyncadd [#allocation3], %s26
      %s28 = sshll.u32 [#allocation2], 4
      %s29 = int_to_ptr.vmem [resolvable:$true] %s28
      %34 = dma.hbm_to_vmem [thread:$0]  %s3, 4096, %s29, [#allocation3], 128, 128, 8
    $region17: #{_actor_forward.1} parent=1 // pred_fallthru
      _
    // Predicated region
    $region18: #{_actor_forward.1} parent=1 // pred_check
      _
    $region19: #{_actor_forward.1} parent=1 // pred_check_branch
      %36 = sbr.rel (0) target = $region21
    $region20: #{_actor_forward.1} parent=1 // pred_region
      _
    $region21: #{_actor_forward.1} parent=1 // pred_fallthru
      _
    // Predicated region
    $region22: #{_actor_forward.1} parent=1 // pred_check
      _
    $region23: #{_actor_forward.1} parent=1 // pred_check_branch
      %38 = sbr.rel (0) target = $region25
    $region24: #{_actor_forward.1} parent=1 // pred_region
      %s40 = ssub.s32 4096, 4096
      %41 = vsyncadd [#allocation6], %s40
      %s42 = sshll.u32 [#allocation5], 4
      %s43 = int_to_ptr.vmem [resolvable:$true] %s42
      %48 = dma.hbm_to_vmem [thread:$0]  %s5, 4096, %s43, [#allocation6], 128, 128, 8
    $region25: #{_actor_forward.1} parent=1 // pred_fallthru
      _
    // Predicated region
    $region26: #{_actor_forward.1} parent=1 // pred_check
      _
    $region27: #{_actor_forward.1} parent=1 // pred_check_branch
      %50 = sbr.rel (0) target = $region29
    $region28: #{_actor_forward.1} parent=1 // pred_region
      _
    $region29: #{_actor_forward.1} parent=1 // pred_fallthru
      _
    // Predicated region
    $region30: #{_actor_forward.1} parent=1 // pred_check
      _
    $region31: #{_actor_forward.1} parent=1 // pred_check_branch
      %52 = sbr.rel (0) target = $region33
    $region32: #{_actor_forward.1} parent=1 // pred_region
      %s54 = ssub.s32 2048, 2048
      %55 = vsyncadd [#allocation6], %s54
      %s56 = sshll.u32 [#allocation7], 4
      %s57 = int_to_ptr.vmem [resolvable:$true] %s56
      %62 = dma.hbm_to_vmem [thread:$0]  %s7, 2048, %s57, [#allocation6], 64, 64, 4
    $region33: #{_actor_forward.1} parent=1 // pred_fallthru
      _
    // Predicated region
    $region34: #{_actor_forward.1} parent=1 // pred_check
      _
    $region35: #{_actor_forward.1} parent=1 // pred_check_branch
      %64 = sbr.rel (0) target = $region37
    $region36: #{_actor_forward.1} parent=1 // pred_region
      _
    $region37: #{_actor_forward.1} parent=1 // pred_fallthru
      _
    // Predicated region
    $region38: #{_actor_forward.1} parent=1 // pred_check
      _
    $region39: #{_actor_forward.1} parent=1 // pred_check_branch
      %66 = sbr.rel (0) target = $region41
    $region40: #{_actor_forward.1} parent=1 // pred_region
      %67 = dma.done [#allocation3], 4096
    $region41: #{_actor_forward.1} parent=1 // pred_fallthru
      _
    // Predicated region
    $region42: #{_actor_forward.1} parent=1 // pred_check
      _
    $region43: #{_actor_forward.1} parent=1 // pred_check_branch
      %69 = sbr.rel (0) target = $region45
    $region44: #{_actor_forward.1} parent=1 // pred_region
      %70 = dma.done [#allocation6], 4096
    $region45: #{_actor_forward.1} parent=1 // pred_fallthru
      _
    // Predicated region
    $region46: #{_actor_forward.1} parent=1 // pred_check
      _
    $region47: #{_actor_forward.1} parent=1 // pred_check_branch
      %72 = sbr.rel (0) target = $region49
    $region48: #{_actor_forward.1} parent=1 // pred_region
      %73 = dma.done [#allocation6], 2048
    $region49: #{_actor_forward.1} parent=1 // pred_fallthru
      _
    %v75 = vld [vmem:[%s1] sm:$0xff]
    %v76 = vld [vmem:[#allocation2] sm:$0xff]
    %v77 = vld [vmem:[#allocation2 + $0x8] sm:$0xff]
    %v78 = vld [vmem:[#allocation2 + $0x10] sm:$0xff]
    %v79 = vld [vmem:[#allocation2 + $0x18] sm:$0xff]
    %v80 = vld [vmem:[#allocation2 + $0x20] sm:$0xff]
    %v81 = vld [vmem:[#allocation2 + $0x28] sm:$0xff]
    %v82 = vld [vmem:[#allocation2 + $0x30] sm:$0xff]
    %v83 = vld [vmem:[#allocation2 + $0x38] sm:$0xff]
    %v84 = vld [vmem:[#allocation2 + $0x40] sm:$0xff]
    %v85 = vld [vmem:[#allocation2 + $0x48] sm:$0xff]
    %v86 = vld [vmem:[#allocation2 + $0x50] sm:$0xff]
    %v87 = vld [vmem:[#allocation2 + $0x58] sm:$0xff]
    %v88 = vld [vmem:[#allocation2 + $0x60] sm:$0xff]
    %v89 = vld [vmem:[#allocation2 + $0x68] sm:$0xff]
    %v90 = vld [vmem:[#allocation2 + $0x70] sm:$0xff]
    %v91 = vld [vmem:[#allocation2 + $0x78] sm:$0xff]
    %v92 = vld [vmem:[#allocation2 + $0x80] sm:$0xff]
    %v93 = vld [vmem:[#allocation2 + $0x88] sm:$0xff]
    %v94 = vld [vmem:[#allocation2 + $0x90] sm:$0xff]
    %v95 = vld [vmem:[#allocation2 + $0x98] sm:$0xff]
    %v96 = vld [vmem:[#allocation2 + $0xa0] sm:$0xff]
    %v97 = vld [vmem:[#allocation2 + $0xa8] sm:$0xff]
    %v98 = vld [vmem:[#allocation2 + $0xb0] sm:$0xff]
    %v99 = vld [vmem:[#allocation2 + $0xb8] sm:$0xff]
    %v100 = vld [vmem:[#allocation2 + $0xc0] sm:$0xff]
    %v101 = vld [vmem:[#allocation2 + $0xc8] sm:$0xff]
    %v102 = vld [vmem:[#allocation2 + $0xd0] sm:$0xff]
    %v103 = vld [vmem:[#allocation2 + $0xd8] sm:$0xff]
    %v104 = vld [vmem:[#allocation2 + $0xe0] sm:$0xff]
    %v105 = vld [vmem:[#allocation2 + $0xe8] sm:$0xff]
    %v106 = vld [vmem:[#allocation2 + $0xf0] sm:$0xff]
    %v107 = vld [vmem:[#allocation2 + $0xf8] sm:$0xff]
    %v108 = vld [vmem:[#allocation5] sm:$0xff]
    %v109 = vld [vmem:[#allocation5 + $0x8] sm:$0xff]
    %v110 = vld [vmem:[#allocation5 + $0x10] sm:$0xff]
    %v111 = vld [vmem:[#allocation5 + $0x18] sm:$0xff]
    %v112 = vld [vmem:[#allocation5 + $0x20] sm:$0xff]
    %v113 = vld [vmem:[#allocation5 + $0x28] sm:$0xff]
    %v114 = vld [vmem:[#allocation5 + $0x30] sm:$0xff]
    %v115 = vld [vmem:[#allocation5 + $0x38] sm:$0xff]
    %v116 = vld [vmem:[#allocation5 + $0x40] sm:$0xff]
    %v117 = vld [vmem:[#allocation5 + $0x48] sm:$0xff]
    %v118 = vld [vmem:[#allocation5 + $0x50] sm:$0xff]
    %v119 = vld [vmem:[#allocation5 + $0x58] sm:$0xff]
    %v120 = vld [vmem:[#allocation5 + $0x60] sm:$0xff]
    %v121 = vld [vmem:[#allocation5 + $0x68] sm:$0xff]
    %v122 = vld [vmem:[#allocation5 + $0x70] sm:$0xff]
    %v123 = vld [vmem:[#allocation5 + $0x78] sm:$0xff]
    %v124 = vld [vmem:[#allocation5 + $0x80] sm:$0xff]
    %v125 = vld [vmem:[#allocation5 + $0x88] sm:$0xff]
    %v126 = vld [vmem:[#allocation5 + $0x90] sm:$0xff]
    %v127 = vld [vmem:[#allocation5 + $0x98] sm:$0xff]
    %v128 = vld [vmem:[#allocation5 + $0xa0] sm:$0xff]
    %v129 = vld [vmem:[#allocation5 + $0xa8] sm:$0xff]
    %v130 = vld [vmem:[#allocation5 + $0xb0] sm:$0xff]
    %v131 = vld [vmem:[#allocation5 + $0xb8] sm:$0xff]
    %v132 = vld [vmem:[#allocation5 + $0xc0] sm:$0xff]
    %v133 = vld [vmem:[#allocation5 + $0xc8] sm:$0xff]
    %v134 = vld [vmem:[#allocation5 + $0xd0] sm:$0xff]
    %v135 = vld [vmem:[#allocation5 + $0xd8] sm:$0xff]
    %v136 = vld [vmem:[#allocation5 + $0xe0] sm:$0xff]
    %v137 = vld [vmem:[#allocation5 + $0xe8] sm:$0xff]
    %v138 = vld [vmem:[#allocation5 + $0xf0] sm:$0xff]
    %v139 = vld [vmem:[#allocation5 + $0xf8] sm:$0xff]
    %v140 = vld [vmem:[#allocation7] sm:$0xf]
    %v141 = vld [vmem:[#allocation7 + $0x4] sm:$0xf]
    %v142 = vld [vmem:[#allocation7 + $0x8] sm:$0xf]
    %v143 = vld [vmem:[#allocation7 + $0xc] sm:$0xf]
    %v144 = vld [vmem:[#allocation7 + $0x10] sm:$0xf]
    %v145 = vld [vmem:[#allocation7 + $0x14] sm:$0xf]
    %v146 = vld [vmem:[#allocation7 + $0x18] sm:$0xf]
    %v147 = vld [vmem:[#allocation7 + $0x1c] sm:$0xf]
    %v148 = vld [vmem:[#allocation7 + $0x20] sm:$0xf]
    %v149 = vld [vmem:[#allocation7 + $0x24] sm:$0xf]
    %v150 = vld [vmem:[#allocation7 + $0x28] sm:$0xf]
    %v151 = vld [vmem:[#allocation7 + $0x2c] sm:$0xf]
    %v152 = vld [vmem:[#allocation7 + $0x30] sm:$0xf]
    %v153 = vld [vmem:[#allocation7 + $0x34] sm:$0xf]
    %v154 = vld [vmem:[#allocation7 + $0x38] sm:$0xf]
    %v155 = vld [vmem:[#allocation7 + $0x3c] sm:$0xf]
    %v156 = vld [vmem:[#allocation7 + $0x40] sm:$0xf]
    %v157 = vld [vmem:[#allocation7 + $0x44] sm:$0xf]
    %v158 = vld [vmem:[#allocation7 + $0x48] sm:$0xf]
    %v159 = vld [vmem:[#allocation7 + $0x4c] sm:$0xf]
    %v160 = vld [vmem:[#allocation7 + $0x50] sm:$0xf]
    %v161 = vld [vmem:[#allocation7 + $0x54] sm:$0xf]
    %v162 = vld [vmem:[#allocation7 + $0x58] sm:$0xf]
    %v163 = vld [vmem:[#allocation7 + $0x5c] sm:$0xf]
    %v164 = vld [vmem:[#allocation7 + $0x60] sm:$0xf]
    %v165 = vld [vmem:[#allocation7 + $0x64] sm:$0xf]
    %v166 = vld [vmem:[#allocation7 + $0x68] sm:$0xf]
    %v167 = vld [vmem:[#allocation7 + $0x6c] sm:$0xf]
    %v168 = vld [vmem:[#allocation7 + $0x70] sm:$0xf]
    %v169 = vld [vmem:[#allocation7 + $0x74] sm:$0xf]
    %v170 = vld [vmem:[#allocation7 + $0x78] sm:$0xf]
    %v171 = vld [vmem:[#allocation7 + $0x7c] sm:$0xf]
    %v172 = vld [vmem:[%s2] sm:$0x3]
    %v173 = vld [vmem:[%s4] sm:$0x3]
    %v174 = vld [vmem:[%s6] sm:$0x3]
    %v175 = vld [vmem:[%s8] sm:$0x1]
    %v176 = vld [vmem:[%s0] sm:$0xff]
    %v177 = vld [vmem:[%s0 + $0x8] sm:$0xff]
    %v178 = vld [vmem:[%s0 + $0x10] sm:$0xff]
    %v179 = vld [vmem:[%s0 + $0x18] sm:$0xff]
    %v180 = vpack.c.bf16 %v177, %v176
    %v181 = vpack.c.bf16 %v179, %v178
    %v183 = vlaneseq
    %v184 = vshrl.u32 %v183, 7
    %v185 = vsub.s32 0, %v184
    %v186 = vrot.slane %v172, %v185
    %v187 = vlaneseq
    %v188 = vshrl.u32 %v187, 7
    %v189 = vsub.s32 1, %v188
    %v190 = vrot.slane %v172, %v189
    %v194 = vunpack.c.l.b16 %v75
    %v195 = vunpack.c.h.b16 %v75
    %v196 = vpack.c.b16 %v194, %v194
    %v197 = vpack.c.b16 %v195, %v195
    %vm198 = vcmask 64512
    %v200 = vsel %vm198, %v180, 0
    %v203 = vsel %vm198, %v181, 0
    %vm205 = vcmask 1043456
    %v207 = vsel %vm205, %v196, 0
    %v210 = vsel %vm205, %v197, 0
    %212 = vmatprep.subr.bf16.mxu0 %v210
    %213 = vmatpush1.bf16.msra.mxu0 %v207
    %214 = vmatprep.subr.bf16.mxu0 0
    %215 = vmatpush1.bf16.msra.mxu0 0
    %216 = vmatprep.subr.bf16.mxu0 0
    %217 = vmatpush1.bf16.msra.mxu0 0
    %218 = vmatprep.subr.bf16.mxu0 0
    %219 = vmatpush1.bf16.msra.mxu0 0
    %220 = vmatprep.subr.bf16.mxu0 0
    %221 = vmatpush1.bf16.msra.mxu0 0
    %222 = vmatprep.subr.bf16.mxu0 0
    %223 = vmatpush1.bf16.msra.mxu0 0
    %224 = vmatprep.subr.bf16.mxu0 0
    %225 = vmatpush1.bf16.msra.mxu0 0
    %226 = vmatprep.subr.bf16.mxu0 0
    %227 = vmatpush1.bf16.msra.mxu0 0
    %228 = vmatprep.subr.bf16.mxu0 0
    %229 = vmatpush1.bf16.msra.mxu0 0
    %230 = vmatprep.subr.bf16.mxu0 0
    %231 = vmatpush1.bf16.msra.mxu0 0
    %232 = vmatprep.subr.bf16.mxu0 0
    %233 = vmatpush1.bf16.msra.mxu0 0
    %234 = vmatprep.subr.bf16.mxu0 0
    %235 = vmatpush1.bf16.msra.mxu0 0
    %236 = vmatprep.subr.bf16.mxu0 0
    %237 = vmatpush1.bf16.msra.mxu0 0
    %238 = vmatprep.subr.bf16.mxu0 0
    %239 = vmatpush1.bf16.msra.mxu0 0
    %240 = vmatprep.subr.bf16.mxu0 0
    %241 = vmatpush1.bf16.msra.mxu0 0
    %242 = vmatprep.subr.bf16.mxu0 0
    %243 = vmatpush1.bf16.msra.mxu0 0
    %244 = vmatprep.mubr.bf16.mxu0 0
    %245 = vmatmul.mubr.bf16.gmra.mrb[0].mxu0 %v200
    %v246 = vpop.f32.mrb[0].mxu0
    %v247 = vadd.f32 %v186, %v246
    %v248 = vpop.f32.mrb[0].mxu0
    %v249 = vadd.f32 %v190, %v248
    %v250 = vpop.f32.mrb[0].mxu0
    %v251 = vadd.f32 %v186, %v250
    %v252 = vpop.f32.mrb[0].mxu0
    %v253 = vadd.f32 %v190, %v252
    %254 = vmatprep.mubr.bf16.mxu0 0
    %255 = vmatmul.mubr.bf16.gmra.mrb[0].mxu0 %v203
    %v256 = vpop.f32.mrb[0].mxu0
    %v257 = vadd.f32 %v186, %v256
    %v258 = vpop.f32.mrb[0].mxu0
    %v259 = vadd.f32 %v190, %v258
    %v260 = vpop.f32.mrb[0].mxu0
    %v261 = vadd.f32 %v186, %v260
    %v262 = vpop.f32.mrb[0].mxu0
    %v263 = vadd.f32 %v190, %v262
    %264 = vdwg.mxu0
    %v265 = vpack.c.bf16 %v251, %v247
    %v266 = vpack.c.bf16 %v253, %v249
    %v267 = vpack.c.bf16 %v261, %v257
    %v268 = vpack.c.bf16 %v263, %v259
    %v269 = vtanh.bf16.pop %v265
    %v270 = vtanh.bf16.pop %v266
    %v271 = vtanh.bf16.pop %v267
    %v272 = vtanh.bf16.pop %v268
    %v274 = vlaneseq
    %v275 = vshrl.u32 %v274, 7
    %v276 = vsub.s32 0, %v275
    %v277 = vrot.slane %v173, %v276
    %v278 = vlaneseq
    %v279 = vshrl.u32 %v278, 7
    %v280 = vsub.s32 1, %v279
    %v281 = vrot.slane %v173, %v280
    %v316 = vunpack.c.l.b16 %v76
    %v317 = vunpack.c.h.b16 %v76
    %v318 = vunpack.c.l.b16 %v77
    %v319 = vunpack.c.h.b16 %v77
    %v320 = vunpack.c.l.b16 %v78
    %v321 = vunpack.c.h.b16 %v78
    %v322 = vunpack.c.l.b16 %v79
    %v323 = vunpack.c.h.b16 %v79
    %v324 = vunpack.c.l.b16 %v80
    %v325 = vunpack.c.h.b16 %v80
    %v326 = vunpack.c.l.b16 %v81
    %v327 = vunpack.c.h.b16 %v81
    %v328 = vunpack.c.l.b16 %v82
    %v329 = vunpack.c.h.b16 %v82
    %v330 = vunpack.c.l.b16 %v83
    %v331 = vunpack.c.h.b16 %v83
    %v332 = vunpack.c.l.b16 %v84
    %v333 = vunpack.c.h.b16 %v84
    %v334 = vunpack.c.l.b16 %v85
    %v335 = vunpack.c.h.b16 %v85
    %v336 = vunpack.c.l.b16 %v86
    %v337 = vunpack.c.h.b16 %v86
    %v338 = vunpack.c.l.b16 %v87
    %v339 = vunpack.c.h.b16 %v87
    %v340 = vunpack.c.l.b16 %v88
    %v341 = vunpack.c.h.b16 %v88
    %v342 = vunpack.c.l.b16 %v89
    %v343 = vunpack.c.h.b16 %v89
    %v344 = vunpack.c.l.b16 %v90
    %v345 = vunpack.c.h.b16 %v90
    %v346 = vunpack.c.l.b16 %v91
    %v347 = vunpack.c.h.b16 %v91
    %v348 = vunpack.c.l.b16 %v92
    %v349 = vunpack.c.h.b16 %v92
    %v350 = vunpack.c.l.b16 %v93
    %v351 = vunpack.c.h.b16 %v93
    %v352 = vunpack.c.l.b16 %v94
    %v353 = vunpack.c.h.b16 %v94
    %v354 = vunpack.c.l.b16 %v95
    %v355 = vunpack.c.h.b16 %v95
    %v356 = vunpack.c.l.b16 %v96
    %v357 = vunpack.c.h.b16 %v96
    %v358 = vunpack.c.l.b16 %v97
    %v359 = vunpack.c.h.b16 %v97
    %v360 = vunpack.c.l.b16 %v98
    %v361 = vunpack.c.h.b16 %v98
    %v362 = vunpack.c.l.b16 %v99
    %v363 = vunpack.c.h.b16 %v99
    %v364 = vunpack.c.l.b16 %v100
    %v365 = vunpack.c.h.b16 %v100
    %v366 = vunpack.c.l.b16 %v101
    %v367 = vunpack.c.h.b16 %v101
    %v368 = vunpack.c.l.b16 %v102
    %v369 = vunpack.c.h.b16 %v102
    %v370 = vunpack.c.l.b16 %v103
    %v371 = vunpack.c.h.b16 %v103
    %v372 = vunpack.c.l.b16 %v104
    %v373 = vunpack.c.h.b16 %v104
    %v374 = vunpack.c.l.b16 %v105
    %v375 = vunpack.c.h.b16 %v105
    %v376 = vunpack.c.l.b16 %v106
    %v377 = vunpack.c.h.b16 %v106
    %v378 = vunpack.c.l.b16 %v107
    %v379 = vunpack.c.h.b16 %v107
    %v380 = vpack.c.b16 %v318, %v316
    %v381 = vpack.c.b16 %v319, %v317
    %v382 = vpack.c.b16 %v322, %v320
    %v383 = vpack.c.b16 %v323, %v321
    %v384 = vpack.c.b16 %v326, %v324
    %v385 = vpack.c.b16 %v327, %v325
    %v386 = vpack.c.b16 %v330, %v328
    %v387 = vpack.c.b16 %v331, %v329
    %v388 = vpack.c.b16 %v334, %v332
    %v389 = vpack.c.b16 %v335, %v333
    %v390 = vpack.c.b16 %v338, %v336
    %v391 = vpack.c.b16 %v339, %v337
    %v392 = vpack.c.b16 %v342, %v340
    %v393 = vpack.c.b16 %v343, %v341
    %v394 = vpack.c.b16 %v346, %v344
    %v395 = vpack.c.b16 %v347, %v345
    %v396 = vpack.c.b16 %v350, %v348
    %v397 = vpack.c.b16 %v351, %v349
    %v398 = vpack.c.b16 %v354, %v352
    %v399 = vpack.c.b16 %v355, %v353
    %v400 = vpack.c.b16 %v358, %v356
    %v401 = vpack.c.b16 %v359, %v357
    %v402 = vpack.c.b16 %v362, %v360
    %v403 = vpack.c.b16 %v363, %v361
    %v404 = vpack.c.b16 %v366, %v364
    %v405 = vpack.c.b16 %v367, %v365
    %v406 = vpack.c.b16 %v370, %v368
    %v407 = vpack.c.b16 %v371, %v369
    %v408 = vpack.c.b16 %v374, %v372
    %v409 = vpack.c.b16 %v375, %v373
    %v410 = vpack.c.b16 %v378, %v376
    %v411 = vpack.c.b16 %v379, %v377
    %444 = vmatprep.subr.bf16.mxu0 %v381
    %445 = vmatpush1.bf16.msra.mxu0 %v380
    %446 = vmatprep.subr.bf16.mxu0 %v383
    %447 = vmatpush1.bf16.msra.mxu0 %v382
    %448 = vmatprep.subr.bf16.mxu0 %v385
    %449 = vmatpush1.bf16.msra.mxu0 %v384
    %450 = vmatprep.subr.bf16.mxu0 %v387
    %451 = vmatpush1.bf16.msra.mxu0 %v386
    %452 = vmatprep.subr.bf16.mxu0 %v389
    %453 = vmatpush1.bf16.msra.mxu0 %v388
    %454 = vmatprep.subr.bf16.mxu0 %v391
    %455 = vmatpush1.bf16.msra.mxu0 %v390
    %456 = vmatprep.subr.bf16.mxu0 %v393
    %457 = vmatpush1.bf16.msra.mxu0 %v392
    %458 = vmatprep.subr.bf16.mxu0 %v395
    %459 = vmatpush1.bf16.msra.mxu0 %v394
    %460 = vmatprep.subr.bf16.mxu0 %v397
    %461 = vmatpush1.bf16.msra.mxu0 %v396
    %462 = vmatprep.subr.bf16.mxu0 %v399
    %463 = vmatpush1.bf16.msra.mxu0 %v398
    %464 = vmatprep.subr.bf16.mxu0 %v401
    %465 = vmatpush1.bf16.msra.mxu0 %v400
    %466 = vmatprep.subr.bf16.mxu0 %v403
    %467 = vmatpush1.bf16.msra.mxu0 %v402
    %468 = vmatprep.subr.bf16.mxu0 %v405
    %469 = vmatpush1.bf16.msra.mxu0 %v404
    %470 = vmatprep.subr.bf16.mxu0 %v407
    %471 = vmatpush1.bf16.msra.mxu0 %v406
    %472 = vmatprep.subr.bf16.mxu0 %v409
    %473 = vmatpush1.bf16.msra.mxu0 %v408
    %474 = vmatprep.subr.bf16.mxu0 %v411
    %475 = vmatpush1.bf16.msra.mxu0 %v410
    %476 = vmatprep.mubr.bf16.mxu0 %v270
    %477 = vmatmul.mubr.bf16.gmra.mrb[0].mxu0 %v269
    %v478 = vpop.f32.mrb[0].mxu0
    %v479 = vadd.f32 %v277, %v478
    %v480 = vpop.f32.mrb[0].mxu0
    %v481 = vadd.f32 %v281, %v480
    %v482 = vpop.f32.mrb[0].mxu0
    %v483 = vadd.f32 %v277, %v482
    %v484 = vpop.f32.mrb[0].mxu0
    %v485 = vadd.f32 %v281, %v484
    %486 = vmatprep.mubr.bf16.mxu0 %v272
    %487 = vmatmul.mubr.bf16.gmra.mrb[0].mxu0 %v271
    %v488 = vpop.f32.mrb[0].mxu0
    %v489 = vadd.f32 %v277, %v488
    %v490 = vpop.f32.mrb[0].mxu0
    %v491 = vadd.f32 %v281, %v490
    %v492 = vpop.f32.mrb[0].mxu0
    %v493 = vadd.f32 %v277, %v492
    %v494 = vpop.f32.mrb[0].mxu0
    %v495 = vadd.f32 %v281, %v494
    %496 = vdwg.mxu0
    %v497 = vpack.c.bf16 %v483, %v479
    %v498 = vpack.c.bf16 %v485, %v481
    %v499 = vpack.c.bf16 %v493, %v489
    %v500 = vpack.c.bf16 %v495, %v491
    %v501 = vtanh.bf16.pop %v497
    %v502 = vtanh.bf16.pop %v498
    %v503 = vtanh.bf16.pop %v499
    %v504 = vtanh.bf16.pop %v500
    %v506 = vlaneseq
    %v507 = vshrl.u32 %v506, 7
    %v508 = vsub.s32 0, %v507
    %v509 = vrot.slane %v174, %v508
    %v510 = vlaneseq
    %v511 = vshrl.u32 %v510, 7
    %v512 = vsub.s32 1, %v511
    %v513 = vrot.slane %v174, %v512
    %v548 = vunpack.c.l.b16 %v108
    %v549 = vunpack.c.h.b16 %v108
    %v550 = vunpack.c.l.b16 %v109
    %v551 = vunpack.c.h.b16 %v109
    %v552 = vunpack.c.l.b16 %v110
    %v553 = vunpack.c.h.b16 %v110
    %v554 = vunpack.c.l.b16 %v111
    %v555 = vunpack.c.h.b16 %v111
    %v556 = vunpack.c.l.b16 %v112
    %v557 = vunpack.c.h.b16 %v112
    %v558 = vunpack.c.l.b16 %v113
    %v559 = vunpack.c.h.b16 %v113
    %v560 = vunpack.c.l.b16 %v114
    %v561 = vunpack.c.h.b16 %v114
    %v562 = vunpack.c.l.b16 %v115
    %v563 = vunpack.c.h.b16 %v115
    %v564 = vunpack.c.l.b16 %v116
    %v565 = vunpack.c.h.b16 %v116
    %v566 = vunpack.c.l.b16 %v117
    %v567 = vunpack.c.h.b16 %v117
    %v568 = vunpack.c.l.b16 %v118
    %v569 = vunpack.c.h.b16 %v118
    %v570 = vunpack.c.l.b16 %v119
    %v571 = vunpack.c.h.b16 %v119
    %v572 = vunpack.c.l.b16 %v120
    %v573 = vunpack.c.h.b16 %v120
    %v574 = vunpack.c.l.b16 %v121
    %v575 = vunpack.c.h.b16 %v121
    %v576 = vunpack.c.l.b16 %v122
    %v577 = vunpack.c.h.b16 %v122
    %v578 = vunpack.c.l.b16 %v123
    %v579 = vunpack.c.h.b16 %v123
    %v580 = vunpack.c.l.b16 %v124
    %v581 = vunpack.c.h.b16 %v124
    %v582 = vunpack.c.l.b16 %v125
    %v583 = vunpack.c.h.b16 %v125
    %v584 = vunpack.c.l.b16 %v126
    %v585 = vunpack.c.h.b16 %v126
    %v586 = vunpack.c.l.b16 %v127
    %v587 = vunpack.c.h.b16 %v127
    %v588 = vunpack.c.l.b16 %v128
    %v589 = vunpack.c.h.b16 %v128
    %v590 = vunpack.c.l.b16 %v129
    %v591 = vunpack.c.h.b16 %v129
    %v592 = vunpack.c.l.b16 %v130
    %v593 = vunpack.c.h.b16 %v130
    %v594 = vunpack.c.l.b16 %v131
    %v595 = vunpack.c.h.b16 %v131
    %v596 = vunpack.c.l.b16 %v132
    %v597 = vunpack.c.h.b16 %v132
    %v598 = vunpack.c.l.b16 %v133
    %v599 = vunpack.c.h.b16 %v133
    %v600 = vunpack.c.l.b16 %v134
    %v601 = vunpack.c.h.b16 %v134
    %v602 = vunpack.c.l.b16 %v135
    %v603 = vunpack.c.h.b16 %v135
    %v604 = vunpack.c.l.b16 %v136
    %v605 = vunpack.c.h.b16 %v136
    %v606 = vunpack.c.l.b16 %v137
    %v607 = vunpack.c.h.b16 %v137
    %v608 = vunpack.c.l.b16 %v138
    %v609 = vunpack.c.h.b16 %v138
    %v610 = vunpack.c.l.b16 %v139
    %v611 = vunpack.c.h.b16 %v139
    %v612 = vpack.c.b16 %v550, %v548
    %v613 = vpack.c.b16 %v551, %v549
    %v614 = vpack.c.b16 %v554, %v552
    %v615 = vpack.c.b16 %v555, %v553
    %v616 = vpack.c.b16 %v558, %v556
    %v617 = vpack.c.b16 %v559, %v557
    %v618 = vpack.c.b16 %v562, %v560
    %v619 = vpack.c.b16 %v563, %v561
    %v620 = vpack.c.b16 %v566, %v564
    %v621 = vpack.c.b16 %v567, %v565
    %v622 = vpack.c.b16 %v570, %v568
    %v623 = vpack.c.b16 %v571, %v569
    %v624 = vpack.c.b16 %v574, %v572
    %v625 = vpack.c.b16 %v575, %v573
    %v626 = vpack.c.b16 %v578, %v576
    %v627 = vpack.c.b16 %v579, %v577
    %v628 = vpack.c.b16 %v582, %v580
    %v629 = vpack.c.b16 %v583, %v581
    %v630 = vpack.c.b16 %v586, %v584
    %v631 = vpack.c.b16 %v587, %v585
    %v632 = vpack.c.b16 %v590, %v588
    %v633 = vpack.c.b16 %v591, %v589
    %v634 = vpack.c.b16 %v594, %v592
    %v635 = vpack.c.b16 %v595, %v593
    %v636 = vpack.c.b16 %v598, %v596
    %v637 = vpack.c.b16 %v599, %v597
    %v638 = vpack.c.b16 %v602, %v600
    %v639 = vpack.c.b16 %v603, %v601
    %v640 = vpack.c.b16 %v606, %v604
    %v641 = vpack.c.b16 %v607, %v605
    %v642 = vpack.c.b16 %v610, %v608
    %v643 = vpack.c.b16 %v611, %v609
    %676 = vmatprep.subr.bf16.mxu0 %v613
    %677 = vmatpush1.bf16.msra.mxu0 %v612
    %678 = vmatprep.subr.bf16.mxu0 %v615
    %679 = vmatpush1.bf16.msra.mxu0 %v614
    %680 = vmatprep.subr.bf16.mxu0 %v617
    %681 = vmatpush1.bf16.msra.mxu0 %v616
    %682 = vmatprep.subr.bf16.mxu0 %v619
    %683 = vmatpush1.bf16.msra.mxu0 %v618
    %684 = vmatprep.subr.bf16.mxu0 %v621
    %685 = vmatpush1.bf16.msra.mxu0 %v620
    %686 = vmatprep.subr.bf16.mxu0 %v623
    %687 = vmatpush1.bf16.msra.mxu0 %v622
    %688 = vmatprep.subr.bf16.mxu0 %v625
    %689 = vmatpush1.bf16.msra.mxu0 %v624
    %690 = vmatprep.subr.bf16.mxu0 %v627
    %691 = vmatpush1.bf16.msra.mxu0 %v626
    %692 = vmatprep.subr.bf16.mxu0 %v629
    %693 = vmatpush1.bf16.msra.mxu0 %v628
    %694 = vmatprep.subr.bf16.mxu0 %v631
    %695 = vmatpush1.bf16.msra.mxu0 %v630
    %696 = vmatprep.subr.bf16.mxu0 %v633
    %697 = vmatpush1.bf16.msra.mxu0 %v632
    %698 = vmatprep.subr.bf16.mxu0 %v635
    %699 = vmatpush1.bf16.msra.mxu0 %v634
    %700 = vmatprep.subr.bf16.mxu0 %v637
    %701 = vmatpush1.bf16.msra.mxu0 %v636
    %702 = vmatprep.subr.bf16.mxu0 %v639
    %703 = vmatpush1.bf16.msra.mxu0 %v638
    %704 = vmatprep.subr.bf16.mxu0 %v641
    %705 = vmatpush1.bf16.msra.mxu0 %v640
    %706 = vmatprep.subr.bf16.mxu0 %v643
    %707 = vmatpush1.bf16.msra.mxu0 %v642
    %708 = vmatprep.mubr.bf16.mxu0 %v502
    %709 = vmatmul.mubr.bf16.gmra.mrb[0].mxu0 %v501
    %v710 = vpop.f32.mrb[0].mxu0
    %v711 = vadd.f32 %v509, %v710
    %v712 = vpop.f32.mrb[0].mxu0
    %v713 = vadd.f32 %v513, %v712
    %v714 = vpop.f32.mrb[0].mxu0
    %v715 = vadd.f32 %v509, %v714
    %v716 = vpop.f32.mrb[0].mxu0
    %v717 = vadd.f32 %v513, %v716
    %718 = vmatprep.mubr.bf16.mxu0 %v504
    %719 = vmatmul.mubr.bf16.gmra.mrb[0].mxu0 %v503
    %v720 = vpop.f32.mrb[0].mxu0
    %v721 = vadd.f32 %v509, %v720
    %v722 = vpop.f32.mrb[0].mxu0
    %v723 = vadd.f32 %v513, %v722
    %v724 = vpop.f32.mrb[0].mxu0
    %v725 = vadd.f32 %v509, %v724
    %v726 = vpop.f32.mrb[0].mxu0
    %v727 = vadd.f32 %v513, %v726
    %728 = vdwg.mxu0
    %v729 = vpack.c.bf16 %v715, %v711
    %v730 = vpack.c.bf16 %v717, %v713
    %v731 = vpack.c.bf16 %v725, %v721
    %v732 = vpack.c.bf16 %v727, %v723
    %v733 = vtanh.bf16.pop %v729
    %v734 = vtanh.bf16.pop %v730
    %v735 = vtanh.bf16.pop %v731
    %v736 = vtanh.bf16.pop %v732
    %v738 = vlaneseq
    %v739 = vshrl.u32 %v738, 7
    %v740 = vsub.s32 0, %v739
    %v741 = vrot.slane %v175, %v740
    %v775 = vunpack.c.l.b16 %v140
    %v776 = vunpack.c.l.b16 %v141
    %v777 = vunpack.c.l.b16 %v142
    %v778 = vunpack.c.l.b16 %v143
    %v779 = vunpack.c.l.b16 %v144
    %v780 = vunpack.c.l.b16 %v145
    %v781 = vunpack.c.l.b16 %v146
    %v782 = vunpack.c.l.b16 %v147
    %v783 = vunpack.c.l.b16 %v148
    %v784 = vunpack.c.l.b16 %v149
    %v785 = vunpack.c.l.b16 %v150
    %v786 = vunpack.c.l.b16 %v151
    %v787 = vunpack.c.l.b16 %v152
    %v788 = vunpack.c.l.b16 %v153
    %v789 = vunpack.c.l.b16 %v154
    %v790 = vunpack.c.l.b16 %v155
    %v791 = vunpack.c.l.b16 %v156
    %v792 = vunpack.c.l.b16 %v157
    %v793 = vunpack.c.l.b16 %v158
    %v794 = vunpack.c.l.b16 %v159
    %v795 = vunpack.c.l.b16 %v160
    %v796 = vunpack.c.l.b16 %v161
    %v797 = vunpack.c.l.b16 %v162
    %v798 = vunpack.c.l.b16 %v163
    %v799 = vunpack.c.l.b16 %v164
    %v800 = vunpack.c.l.b16 %v165
    %v801 = vunpack.c.l.b16 %v166
    %v802 = vunpack.c.l.b16 %v167
    %v803 = vunpack.c.l.b16 %v168
    %v804 = vunpack.c.l.b16 %v169
    %v805 = vunpack.c.l.b16 %v170
    %v806 = vunpack.c.l.b16 %v171
    %v807 = vpack.c.b16 %v776, %v775
    %v808 = vpack.c.b16 %v778, %v777
    %v809 = vpack.c.b16 %v780, %v779
    %v810 = vpack.c.b16 %v782, %v781
    %v811 = vpack.c.b16 %v784, %v783
    %v812 = vpack.c.b16 %v786, %v785
    %v813 = vpack.c.b16 %v788, %v787
    %v814 = vpack.c.b16 %v790, %v789
    %v815 = vpack.c.b16 %v792, %v791
    %v816 = vpack.c.b16 %v794, %v793
    %v817 = vpack.c.b16 %v796, %v795
    %v818 = vpack.c.b16 %v798, %v797
    %v819 = vpack.c.b16 %v800, %v799
    %v820 = vpack.c.b16 %v802, %v801
    %v821 = vpack.c.b16 %v804, %v803
    %v822 = vpack.c.b16 %v806, %v805
    %839 = vmatprep.subr.bf16.mxu0 0
    %840 = vmatpush1.bf16.msra.mxu0 %v807
    %841 = vmatprep.subr.bf16.mxu0 0
    %842 = vmatpush1.bf16.msra.mxu0 %v808
    %843 = vmatprep.subr.bf16.mxu0 0
    %844 = vmatpush1.bf16.msra.mxu0 %v809
    %845 = vmatprep.subr.bf16.mxu0 0
    %846 = vmatpush1.bf16.msra.mxu0 %v810
    %847 = vmatprep.subr.bf16.mxu0 0
    %848 = vmatpush1.bf16.msra.mxu0 %v811
    %849 = vmatprep.subr.bf16.mxu0 0
    %850 = vmatpush1.bf16.msra.mxu0 %v812
    %851 = vmatprep.subr.bf16.mxu0 0
    %852 = vmatpush1.bf16.msra.mxu0 %v813
    %853 = vmatprep.subr.bf16.mxu0 0
    %854 = vmatpush1.bf16.msra.mxu0 %v814
    %855 = vmatprep.subr.bf16.mxu0 0
    %856 = vmatpush1.bf16.msra.mxu0 %v815
    %857 = vmatprep.subr.bf16.mxu0 0
    %858 = vmatpush1.bf16.msra.mxu0 %v816
    %859 = vmatprep.subr.bf16.mxu0 0
    %860 = vmatpush1.bf16.msra.mxu0 %v817
    %861 = vmatprep.subr.bf16.mxu0 0
    %862 = vmatpush1.bf16.msra.mxu0 %v818
    %863 = vmatprep.subr.bf16.mxu0 0
    %864 = vmatpush1.bf16.msra.mxu0 %v819
    %865 = vmatprep.subr.bf16.mxu0 0
    %866 = vmatpush1.bf16.msra.mxu0 %v820
    %867 = vmatprep.subr.bf16.mxu0 0
    %868 = vmatpush1.bf16.msra.mxu0 %v821
    %869 = vmatprep.subr.bf16.mxu0 0
    %870 = vmatpush1.bf16.msra.mxu0 %v822
    %871 = vmatprep.mubr.bf16.mxu0 %v734
    %872 = vmatmul.mubr.bf16.gmra.mrb[0].mxu0 %v733
    %v873 = vpop.f32.mrb[0].mxu0
    %v874 = vadd.f32 %v741, %v873
    %v875 = vpop.f32.mrb[0].mxu0
    %v876 = vpop.f32.mrb[0].mxu0
    %v877 = vadd.f32 %v741, %v876
    %v878 = vpop.f32.mrb[0].mxu0
    %879 = vmatprep.mubr.bf16.mxu0 %v736
    %880 = vmatmul.mubr.bf16.gmra.mrb[0].mxu0 %v735
    %v881 = vpop.f32.mrb[0].mxu0
    %v882 = vadd.f32 %v741, %v881
    %v883 = vpop.f32.mrb[0].mxu0
    %v884 = vpop.f32.mrb[0].mxu0
    %v885 = vadd.f32 %v741, %v884
    %v886 = vpop.f32.mrb[0].mxu0
    %887 = vdwg.mxu0
    %v888 = vpack.c.bf16 %v877, %v874
    %v889 = vpack.c.bf16 %v885, %v882
    %v892 = vunpack.c.l.b16 %v888
    %v893 = vunpack.c.h.b16 %v888
    %v894 = vunpack.c.l.b16 %v889
    %v895 = vunpack.c.h.b16 %v889
    %v896 = vpack.c.b16 %v892, %v892
    %v897 = vpack.c.b16 %v893, %v893
    %v898 = vpack.c.b16 %v894, %v894
    %v899 = vpack.c.b16 %v895, %v895
    %904 = vst [vmem:[#allocation8] sm:$0xf] %v896
    %905 = vst [vmem:[#allocation8 + $0x4] sm:$0xf] %v897
    %906 = vst [vmem:[#allocation8 + $0x8] sm:$0xf] %v898
    %907 = vst [vmem:[#allocation8 + $0xc] sm:$0xf] %v899
    %v908 = vld [vmem:[%s0 + $0x20] sm:$0xff]
    %v909 = vld [vmem:[%s0 + $0x28] sm:$0xff]
    %v910 = vld [vmem:[%s0 + $0x30] sm:$0xff]
    %v911 = vld [vmem:[%s0 + $0x38] sm:$0xff]
    %v912 = vpack.c.bf16 %v909, %v908
    %v913 = vpack.c.bf16 %v911, %v910
    %v915 = vsel %vm198, %v912, 0
    %v918 = vsel %vm198, %v913, 0
    %920 = vmatprep.subr.bf16.mxu0 %v210
    %921 = vmatpush1.bf16.msra.mxu0 %v207
    %922 = vmatprep.subr.bf16.mxu0 0
    %923 = vmatpush1.bf16.msra.mxu0 0
    %924 = vmatprep.subr.bf16.mxu0 0
    %925 = vmatpush1.bf16.msra.mxu0 0
    %926 = vmatprep.subr.bf16.mxu0 0
    %927 = vmatpush1.bf16.msra.mxu0 0
    %928 = vmatprep.subr.bf16.mxu0 0
    %929 = vmatpush1.bf16.msra.mxu0 0
    %930 = vmatprep.subr.bf16.mxu0 0
    %931 = vmatpush1.bf16.msra.mxu0 0
    %932 = vmatprep.subr.bf16.mxu0 0
    %933 = vmatpush1.bf16.msra.mxu0 0
    %934 = vmatprep.subr.bf16.mxu0 0
    %935 = vmatpush1.bf16.msra.mxu0 0
    %936 = vmatprep.subr.bf16.mxu0 0
    %937 = vmatpush1.bf16.msra.mxu0 0
    %938 = vmatprep.subr.bf16.mxu0 0
    %939 = vmatpush1.bf16.msra.mxu0 0
    %940 = vmatprep.subr.bf16.mxu0 0
    %941 = vmatpush1.bf16.msra.mxu0 0
    %942 = vmatprep.subr.bf16.mxu0 0
    %943 = vmatpush1.bf16.msra.mxu0 0
    %944 = vmatprep.subr.bf16.mxu0 0
    %945 = vmatpush1.bf16.msra.mxu0 0
    %946 = vmatprep.subr.bf16.mxu0 0
    %947 = vmatpush1.bf16.msra.mxu0 0
    %948 = vmatprep.subr.bf16.mxu0 0
    %949 = vmatpush1.bf16.msra.mxu0 0
    %950 = vmatprep.subr.bf16.mxu0 0
    %951 = vmatpush1.bf16.msra.mxu0 0
    %952 = vmatprep.mubr.bf16.mxu0 0
    %953 = vmatmul.mubr.bf16.gmra.mrb[0].mxu0 %v915
    %v954 = vpop.f32.mrb[0].mxu0
    %v955 = vadd.f32 %v186, %v954
    %v956 = vpop.f32.mrb[0].mxu0
    %v957 = vadd.f32 %v190, %v956
    %v958 = vpop.f32.mrb[0].mxu0
    %v959 = vadd.f32 %v186, %v958
    %v960 = vpop.f32.mrb[0].mxu0
    %v961 = vadd.f32 %v190, %v960
    %962 = vmatprep.mubr.bf16.mxu0 0
    %963 = vmatmul.mubr.bf16.gmra.mrb[0].mxu0 %v918
    %v964 = vpop.f32.mrb[0].mxu0
    %v965 = vadd.f32 %v186, %v964
    %v966 = vpop.f32.mrb[0].mxu0
    %v967 = vadd.f32 %v190, %v966
    %v968 = vpop.f32.mrb[0].mxu0
    %v969 = vadd.f32 %v186, %v968
    %v970 = vpop.f32.mrb[0].mxu0
    %v971 = vadd.f32 %v190, %v970
    %972 = vdwg.mxu0
    %v973 = vpack.c.bf16 %v959, %v955
    %v974 = vpack.c.bf16 %v961, %v957
    %v975 = vpack.c.bf16 %v969, %v965
    %v976 = vpack.c.bf16 %v971, %v967
    %v977 = vtanh.bf16.pop %v973
    %v978 = vtanh.bf16.pop %v974
    %v979 = vtanh.bf16.pop %v975
    %v980 = vtanh.bf16.pop %v976
    %981 = vmatprep.subr.bf16.mxu0 %v381
    %982 = vmatpush1.bf16.msra.mxu0 %v380
    %983 = vmatprep.subr.bf16.mxu0 %v383
    %984 = vmatpush1.bf16.msra.mxu0 %v382
    %985 = vmatprep.subr.bf16.mxu0 %v385
    %986 = vmatpush1.bf16.msra.mxu0 %v384
    %987 = vmatprep.subr.bf16.mxu0 %v387
    %988 = vmatpush1.bf16.msra.mxu0 %v386
    %989 = vmatprep.subr.bf16.mxu0 %v389
    %990 = vmatpush1.bf16.msra.mxu0 %v388
    %991 = vmatprep.subr.bf16.mxu0 %v391
    %992 = vmatpush1.bf16.msra.mxu0 %v390
    %993 = vmatprep.subr.bf16.mxu0 %v393
    %994 = vmatpush1.bf16.msra.mxu0 %v392
    %995 = vmatprep.subr.bf16.mxu0 %v395
    %996 = vmatpush1.bf16.msra.mxu0 %v394
    %997 = vmatprep.subr.bf16.mxu0 %v397
    %998 = vmatpush1.bf16.msra.mxu0 %v396
    %999 = vmatprep.subr.bf16.mxu0 %v399
    %1000 = vmatpush1.bf16.msra.mxu0 %v398
    %1001 = vmatprep.subr.bf16.mxu0 %v401
    %1002 = vmatpush1.bf16.msra.mxu0 %v400
    %1003 = vmatprep.subr.bf16.mxu0 %v403
    %1004 = vmatpush1.bf16.msra.mxu0 %v402
    %1005 = vmatprep.subr.bf16.mxu0 %v405
    %1006 = vmatpush1.bf16.msra.mxu0 %v404
    %1007 = vmatprep.subr.bf16.mxu0 %v407
    %1008 = vmatpush1.bf16.msra.mxu0 %v406
    %1009 = vmatprep.subr.bf16.mxu0 %v409
    %1010 = vmatpush1.bf16.msra.mxu0 %v408
    %1011 = vmatprep.subr.bf16.mxu0 %v411
    %1012 = vmatpush1.bf16.msra.mxu0 %v410
    %1013 = vmatprep.mubr.bf16.mxu0 %v978
    %1014 = vmatmul.mubr.bf16.gmra.mrb[0].mxu0 %v977
    %v1015 = vpop.f32.mrb[0].mxu0
    %v1016 = vadd.f32 %v277, %v1015
    %v1017 = vpop.f32.mrb[0].mxu0
    %v1018 = vadd.f32 %v281, %v1017
    %v1019 = vpop.f32.mrb[0].mxu0
    %v1020 = vadd.f32 %v277, %v1019
    %v1021 = vpop.f32.mrb[0].mxu0
    %v1022 = vadd.f32 %v281, %v1021
    %1023 = vmatprep.mubr.bf16.mxu0 %v980
    %1024 = vmatmul.mubr.bf16.gmra.mrb[0].mxu0 %v979
    %v1025 = vpop.f32.mrb[0].mxu0
    %v1026 = vadd.f32 %v277, %v1025
    %v1027 = vpop.f32.mrb[0].mxu0
    %v1028 = vadd.f32 %v281, %v1027
    %v1029 = vpop.f32.mrb[0].mxu0
    %v1030 = vadd.f32 %v277, %v1029
    %v1031 = vpop.f32.mrb[0].mxu0
    %v1032 = vadd.f32 %v281, %v1031
    %1033 = vdwg.mxu0
    %v1034 = vpack.c.bf16 %v1020, %v1016
    %v1035 = vpack.c.bf16 %v1022, %v1018
    %v1036 = vpack.c.bf16 %v1030, %v1026
    %v1037 = vpack.c.bf16 %v1032, %v1028
    %v1038 = vtanh.bf16.pop %v1034
    %v1039 = vtanh.bf16.pop %v1035
    %v1040 = vtanh.bf16.pop %v1036
    %v1041 = vtanh.bf16.pop %v1037
    %1042 = vmatprep.subr.bf16.mxu0 %v613
    %1043 = vmatpush1.bf16.msra.mxu0 %v612
    %1044 = vmatprep.subr.bf16.mxu0 %v615
    %1045 = vmatpush1.bf16.msra.mxu0 %v614
    %1046 = vmatprep.subr.bf16.mxu0 %v617
    %1047 = vmatpush1.bf16.msra.mxu0 %v616
    %1048 = vmatprep.subr.bf16.mxu0 %v619
    %1049 = vmatpush1.bf16.msra.mxu0 %v618
    %1050 = vmatprep.subr.bf16.mxu0 %v621
    %1051 = vmatpush1.bf16.msra.mxu0 %v620
    %1052 = vmatprep.subr.bf16.mxu0 %v623
    %1053 = vmatpush1.bf16.msra.mxu0 %v622
    %1054 = vmatprep.subr.bf16.mxu0 %v625
    %1055 = vmatpush1.bf16.msra.mxu0 %v624
    %1056 = vmatprep.subr.bf16.mxu0 %v627
    %1057 = vmatpush1.bf16.msra.mxu0 %v626
    %1058 = vmatprep.subr.bf16.mxu0 %v629
    %1059 = vmatpush1.bf16.msra.mxu0 %v628
    %1060 = vmatprep.subr.bf16.mxu0 %v631
    %1061 = vmatpush1.bf16.msra.mxu0 %v630
    %1062 = vmatprep.subr.bf16.mxu0 %v633
    %1063 = vmatpush1.bf16.msra.mxu0 %v632
    %1064 = vmatprep.subr.bf16.mxu0 %v635
    %1065 = vmatpush1.bf16.msra.mxu0 %v634
    %1066 = vmatprep.subr.bf16.mxu0 %v637
    %1067 = vmatpush1.bf16.msra.mxu0 %v636
    %1068 = vmatprep.subr.bf16.mxu0 %v639
    %1069 = vmatpush1.bf16.msra.mxu0 %v638
    %1070 = vmatprep.subr.bf16.mxu0 %v641
    %1071 = vmatpush1.bf16.msra.mxu0 %v640
    %1072 = vmatprep.subr.bf16.mxu0 %v643
    %1073 = vmatpush1.bf16.msra.mxu0 %v642
    %1074 = vmatprep.mubr.bf16.mxu0 %v1039
    %1075 = vmatmul.mubr.bf16.gmra.mrb[0].mxu0 %v1038
    %v1076 = vpop.f32.mrb[0].mxu0
    %v1077 = vadd.f32 %v509, %v1076
    %v1078 = vpop.f32.mrb[0].mxu0
    %v1079 = vadd.f32 %v513, %v1078
    %v1080 = vpop.f32.mrb[0].mxu0
    %v1081 = vadd.f32 %v509, %v1080
    %v1082 = vpop.f32.mrb[0].mxu0
    %v1083 = vadd.f32 %v513, %v1082
    %1084 = vmatprep.mubr.bf16.mxu0 %v1041
    %1085 = vmatmul.mubr.bf16.gmra.mrb[0].mxu0 %v1040
    %v1086 = vpop.f32.mrb[0].mxu0
    %v1087 = vadd.f32 %v509, %v1086
    %v1088 = vpop.f32.mrb[0].mxu0
    %v1089 = vadd.f32 %v513, %v1088
    %v1090 = vpop.f32.mrb[0].mxu0
    %v1091 = vadd.f32 %v509, %v1090
    %v1092 = vpop.f32.mrb[0].mxu0
    %v1093 = vadd.f32 %v513, %v1092
    %1094 = vdwg.mxu0
    %v1095 = vpack.c.bf16 %v1081, %v1077
    %v1096 = vpack.c.bf16 %v1083, %v1079
    %v1097 = vpack.c.bf16 %v1091, %v1087
    %v1098 = vpack.c.bf16 %v1093, %v1089
    %v1099 = vtanh.bf16.pop %v1095
    %v1100 = vtanh.bf16.pop %v1096
    %v1101 = vtanh.bf16.pop %v1097
    %v1102 = vtanh.bf16.pop %v1098
    %1103 = vmatprep.subr.bf16.mxu0 0
    %1104 = vmatpush1.bf16.msra.mxu0 %v807
    %1105 = vmatprep.subr.bf16.mxu0 0
    %1106 = vmatpush1.bf16.msra.mxu0 %v808
    %1107 = vmatprep.subr.bf16.mxu0 0
    %1108 = vmatpush1.bf16.msra.mxu0 %v809
    %1109 = vmatprep.subr.bf16.mxu0 0
    %1110 = vmatpush1.bf16.msra.mxu0 %v810
    %1111 = vmatprep.subr.bf16.mxu0 0
    %1112 = vmatpush1.bf16.msra.mxu0 %v811
    %1113 = vmatprep.subr.bf16.mxu0 0
    %1114 = vmatpush1.bf16.msra.mxu0 %v812
    %1115 = vmatprep.subr.bf16.mxu0 0
    %1116 = vmatpush1.bf16.msra.mxu0 %v813
    %1117 = vmatprep.subr.bf16.mxu0 0
    %1118 = vmatpush1.bf16.msra.mxu0 %v814
    %1119 = vmatprep.subr.bf16.mxu0 0
    %1120 = vmatpush1.bf16.msra.mxu0 %v815
    %1121 = vmatprep.subr.bf16.mxu0 0
    %1122 = vmatpush1.bf16.msra.mxu0 %v816
    %1123 = vmatprep.subr.bf16.mxu0 0
    %1124 = vmatpush1.bf16.msra.mxu0 %v817
    %1125 = vmatprep.subr.bf16.mxu0 0
    %1126 = vmatpush1.bf16.msra.mxu0 %v818
    %1127 = vmatprep.subr.bf16.mxu0 0
    %1128 = vmatpush1.bf16.msra.mxu0 %v819
    %1129 = vmatprep.subr.bf16.mxu0 0
    %1130 = vmatpush1.bf16.msra.mxu0 %v820
    %1131 = vmatprep.subr.bf16.mxu0 0
    %1132 = vmatpush1.bf16.msra.mxu0 %v821
    %1133 = vmatprep.subr.bf16.mxu0 0
    %1134 = vmatpush1.bf16.msra.mxu0 %v822
    %1135 = vmatprep.mubr.bf16.mxu0 %v1100
    %1136 = vmatmul.mubr.bf16.gmra.mrb[0].mxu0 %v1099
    %v1137 = vpop.f32.mrb[0].mxu0
    %v1138 = vadd.f32 %v741, %v1137
    %v1139 = vpop.f32.mrb[0].mxu0
    %v1140 = vpop.f32.mrb[0].mxu0
    %v1141 = vadd.f32 %v741, %v1140
    %v1142 = vpop.f32.mrb[0].mxu0
    %1143 = vmatprep.mubr.bf16.mxu0 %v1102
    %1144 = vmatmul.mubr.bf16.gmra.mrb[0].mxu0 %v1101
    %v1145 = vpop.f32.mrb[0].mxu0
    %v1146 = vadd.f32 %v741, %v1145
    %v1147 = vpop.f32.mrb[0].mxu0
    %v1148 = vpop.f32.mrb[0].mxu0
    %v1149 = vadd.f32 %v741, %v1148
    %v1150 = vpop.f32.mrb[0].mxu0
    %1151 = vdwg.mxu0
    %v1152 = vpack.c.bf16 %v1141, %v1138
    %v1153 = vpack.c.bf16 %v1149, %v1146
    %v1156 = vunpack.c.l.b16 %v1152
    %v1157 = vunpack.c.h.b16 %v1152
    %v1158 = vunpack.c.l.b16 %v1153
    %v1159 = vunpack.c.h.b16 %v1153
    %v1160 = vpack.c.b16 %v1156, %v1156
    %v1161 = vpack.c.b16 %v1157, %v1157
    %v1162 = vpack.c.b16 %v1158, %v1158
    %v1163 = vpack.c.b16 %v1159, %v1159
    %1168 = vst [vmem:[#allocation8 + $0x10] sm:$0xf] %v1160
    %1169 = vst [vmem:[#allocation8 + $0x14] sm:$0xf] %v1161
    %1170 = vst [vmem:[#allocation8 + $0x18] sm:$0xf] %v1162
    %1171 = vst [vmem:[#allocation8 + $0x1c] sm:$0xf] %v1163
    // Predicated region
    $region50: #{_actor_forward.1} parent=1 // pred_check
      _
    $region51: #{_actor_forward.1} parent=1 // pred_check_branch
      %1173 = sbr.rel (0) target = $region53
    $region52: #{_actor_forward.1} parent=1 // pred_region
      %s1175 = ssub.s32 512, 512
      %1176 = vsyncadd [#allocation4], %s1175
      %s1177 = sshll.u32 [#allocation8], 4
      %s1178 = int_to_ptr.vmem [resolvable:$true] %s1177
      %1183 = dma.vmem_to_hbm [thread:$0]  %s1178, 512, %s9, [#allocation4], 64, 64, 4
    $region53: #{_actor_forward.1} parent=1 // pred_fallthru
      _
    // Predicated region
    $region54: #{_actor_forward.1} parent=1 // pred_check
      _
    $region55: #{_actor_forward.1} parent=1 // pred_check_branch
      %1185 = sbr.rel (0) target = $region57
    $region56: #{_actor_forward.1} parent=1 // pred_region
      %1186 = dma.done [#allocation4], 512
    $region57: #{_actor_forward.1} parent=1 // pred_fallthru
      _
    %1187 = vsyncpa [#allocation3], 1
    %1188 = vsyncpa [#allocation6], 1
    %1189 = vsyncpa [#allocation4], 1

</llo_original>
